<compile_context>
chip_gen: v5e
topology: v5e:2x2
jax: 0.10.0
libtpu: 0.0.40
codegen_flags: <defaults>
</compile_context>

<pallas_src>
import functools

import jax
import jax.numpy as jnp
from jax import lax
from jax.experimental import pallas as pl
from jax.experimental.pallas import tpu as pltpu


def transformer2_kernel(x_ref, wqk_ref, o_ref, *, depth, inner, compute_dtype):
    """One batch element: run all `depth` Attention2 layers in VMEM.

    x_ref:   (N, D)                 input activation for this batch element
    wqk_ref: (depth, D, 2*inner)    per-layer [Wq*scale | Wk], compute dtype
    o_ref:   (N, N)                 final attention map (f32)
    """
    n_rows = x_ref.shape[0]

    def one_layer(h, w):
        # Fused Q/K projection: one MXU call with RHS width 2*inner.
        qk = jnp.dot(h.astype(compute_dtype), w,
                     preferred_element_type=jnp.float32)        # (N, 2*inner) f32
        q = qk[:, :inner]
        k = qk[:, inner:]
        # q @ k^T without materializing a transpose of k (contract feature dim
        # of both operands; MXU consumes the transposed operand natively).
        dots = lax.dot_general(
            q.astype(compute_dtype), k.astype(compute_dtype),
            dimension_numbers=(((1,), (1,)), ((), ())),
            preferred_element_type=jnp.float32,
        )                                                        # (N, N) f32
        # Softmax kept fully in f32 (exact divide; see review correctness note).
        m = jnp.max(dots, axis=-1, keepdims=True)
        e = jnp.exp(dots - m)
        s = jnp.sum(e, axis=-1, keepdims=True)
        return e / s

    h = x_ref[...].astype(jnp.float32)          # stays resident on-chip
    if depth <= 4:
        # Static unroll for shallow stacks.
        for layer in range(depth):
            h = one_layer(h, wqk_ref[layer])
    else:
        # Deep stacks: bound live ranges / code size. Requires D == N (asserted
        # in the wrapper for depth > 1) so the carry shape is uniform.
        h = lax.fori_loop(0, depth, lambda l, hh: one_layer(hh, wqk_ref[l]), h)
    del n_rows
    o_ref[...] = h


def prepare_qk_weights(w_qkv, *, dim_head, compute_dtype=jnp.bfloat16):
    """Split stacked to_qkv weights into one fused [Wq*scale | Wk] stack.

    w_qkv: (depth, D, 3*inner) per-layer nn.Linear weight, pre-transposed to
           (in_features, out_features). The V projection is computed by
           to_qkv in PyTorch but never used by Attention2.forward -> dropped.
    """
    depth, d, three_inner = w_qkv.shape
    inner = three_inner // 3
    scale = float(dim_head) ** (-0.5)
    wq = w_qkv[:, :, :inner] * scale            # fold softmax scale into Wq
    wk = w_qkv[:, :, inner:2 * inner]
    wqk = jnp.concatenate([wq, wk], axis=-1)    # (depth, D, 2*inner)
    return wqk.astype(compute_dtype)


def _vmem_limit_bytes(B, N, D, depth, inner, w_itemsize):
    """Scoped-VMEM budget: activation + per-layer transients + weights + I/O."""
    f32 = 4
    act = N * max(N, D) * f32                       # resident activation h
    transients = 3 * N * N * f32 + N * 2 * inner * f32
    weights = depth * D * 2 * inner * w_itemsize    # single-buffered
    io = 2 * N * D * f32 + 2 * N * N * f32          # double-buffered x / out blocks
    est = int(1.5 * (act + transients + weights + io))
    return max(min(est, 64 * 1024 * 1024), 32 * 1024 * 1024)


def transformer2_forward(x, wqk, *, depth, heads):
    """Pallas implementation of Transformer2.forward (eval mode)."""
    B, N, D = x.shape
    two_inner = wqk.shape[-1]
    inner = two_inner // 2
    compute_dtype = wqk.dtype
    assert heads == 1, "Attention2 stacking requires heads == 1"
    assert wqk.shape == (depth, D, two_inner)
    if depth > 1:
        # Layer l>0 consumes the (B, N, N) attention map through Linear(dim, .),
        # so dim must equal N (same constraint as the PyTorch module).
        assert D == N, "Transformer2 with depth > 1 requires dim == num tokens"

    x = x.astype(jnp.float32)
    kern = functools.partial(transformer2_kernel, depth=depth, inner=inner,
                             compute_dtype=compute_dtype)
    vmem_limit = _vmem_limit_bytes(B, N, D, depth, inner,
                                   jnp.dtype(compute_dtype).itemsize)

    return pl.pallas_call(
        kern,
        out_shape=jax.ShapeDtypeStruct((B, N, N), jnp.float32),
        grid_spec=pl.GridSpec(
            grid=(B,),
            in_specs=[
                pl.BlockSpec((pl.Squeezed(), N, D), lambda b: (b, 0, 0)),
                # Constant index_map over the grid -> single buffer is enough.
                pl.BlockSpec((depth, D, two_inner), lambda b: (0, 0, 0),
                             pipeline_mode=pl.Buffered(1)),
            ],
            out_specs=pl.BlockSpec((pl.Squeezed(), N, N), lambda b: (b, 0, 0)),
        ),
        compiler_params=pltpu.CompilerParams(
            dimension_semantics=("parallel",),
            vmem_limit_bytes=vmem_limit,
        ),
    )(x, wqk)


def transformer2_reference(x, w_qkv, *, depth, heads, dim_head):
    """Pure-JAX f32 reference mirroring the PyTorch forward."""
    inner = heads * dim_head
    scale = float(dim_head) ** (-0.5)
    h = x.astype(jnp.float32)
    for layer in range(depth):
        qkv = h @ w_qkv[layer]                      # (B, N, 3*inner)
        q = qkv[..., :inner]
        k = qkv[..., inner:2 * inner]
        dots = jnp.einsum("bid,bjd->bij", q, k) * scale
        h = jax.nn.softmax(dots, axis=-1)           # squeeze(1) is identity for heads==1
    return h


if __name__ == "__main__":
    # Small shapes consistent with the module. For depth > 1, Attention2
    # stacking requires heads == 1 and dim == num tokens (N).
    B = 2
    N = 8            # tokens
    dim = 8          # must equal N for depth > 1
    depth = 2
    heads = 1
    dim_head = 16
    inner_dim = heads * dim_head

    key = jax.random.PRNGKey(0)
    k_x, k_qkv = jax.random.split(key, 2)

    x = jax.random.normal(k_x, (B, N, dim), dtype=jnp.float32)
    # Per-layer nn.Linear(dim, 3*inner_dim, bias=False), stored pre-transposed
    # as (in_features, out_features) and stacked over depth.
    w_qkv = 0.1 * jax.random.normal(
        k_qkv, (depth, dim, 3 * inner_dim), dtype=jnp.float32
    )
    # TODO(synk): Attention2.to_out (Linear + Dropout) and Transformer2.skipcat
    # convs exist in __init__ but are never used on the forward path -> omitted.

    ref = transformer2_reference(x, w_qkv, depth=depth, heads=heads, dim_head=dim_head)

    # f32 build: tight tolerance against the PyTorch-equivalent reference.
    wqk_f32 = prepare_qk_weights(w_qkv, dim_head=dim_head, compute_dtype=jnp.float32)
    out_f32 = jax.block_until_ready(
        transformer2_forward(x, wqk_f32, depth=depth, heads=heads))
    assert out_f32.shape == (B, N, N)
    assert jnp.allclose(out_f32, ref, atol=1e-5, rtol=1e-5)

    # bf16-MXU build (production default): relaxed tolerance vs the f32 reference.
    wqk_bf16 = prepare_qk_weights(w_qkv, dim_head=dim_head, compute_dtype=jnp.bfloat16)
    out_bf16 = jax.block_until_ready(
        transformer2_forward(x, wqk_bf16, depth=depth, heads=heads))
    assert out_bf16.shape == (B, N, N)
    assert jnp.allclose(out_bf16, ref, atol=3e-2, rtol=3e-2)

    print("KERNEL_OK")
</pallas_src>

<mosaic_0001>
module attributes {stable_mosaic.version = 11 : i64} {
  func.func @transformer2_kernel(%arg0: i32, %arg1: memref<1x8x8xf32, #tpu.memory_space<vmem>>, %arg2: memref<2x8x32xf32, #tpu.memory_space<vmem>>, %arg3: memref<1x8x8xf32, #tpu.memory_space<vmem>>) attributes {dimension_semantics = [#tpu.dimension_semantics<parallel>], iteration_bounds = array<i64: 2>, scalar_prefetch = 0 : i64, scratch_operands = 0 : i64, tpu.core_type = #tpu.core_type<tc>, window_params = [{transform_indices = @transform_0, window_bounds = array<i64: 1, 8, 8>}, {pipeline_mode = #tpu.pipeline_mode<synchronous>, transform_indices = @transform_1, window_bounds = array<i64: 2, 8, 32>}, {transform_indices = @transform_2, window_bounds = array<i64: 1, 8, 8>}]} {
    %c0 = arith.constant 0 : index
    %c0_0 = arith.constant 0 : index
    %c0_1 = arith.constant 0 : index
    %0 = vector.load %arg1[%c0, %c0_0, %c0_1] : memref<1x8x8xf32, #tpu.memory_space<vmem>>, vector<1x8x8xf32>
    %1 = vector.shape_cast %0 : vector<1x8x8xf32> to vector<8x8xf32>
    %c0_2 = arith.constant 0 : index
    %c0_3 = arith.constant 0 : index
    %c0_4 = arith.constant 0 : index
    %2 = vector.load %arg2[%c0_2, %c0_3, %c0_4] : memref<2x8x32xf32, #tpu.memory_space<vmem>>, vector<1x8x32xf32>
    %3 = vector.shape_cast %2 : vector<1x8x32xf32> to vector<8x32xf32>
    %cst = arith.constant dense<0.000000e+00> : vector<8x32xf32>
    %4 = tpu.matmul %1, %3, %cst {dimension_numbers = #tpu.dot_dimension_numbers<[1], [0], [0], [1], [0, 0, 1, 1], [], []>} : vector<8x8xf32>, vector<8x32xf32>, vector<8x32xf32> -> vector<8x32xf32>
    %5 = vector.extract_strided_slice %4 {offsets = [0, 0], sizes = [8, 16], strides = [1, 1]} : vector<8x32xf32> to vector<8x16xf32>
    %6 = vector.extract_strided_slice %4 {offsets = [0, 16], sizes = [8, 16], strides = [1, 1]} : vector<8x32xf32> to vector<8x16xf32>
    %cst_5 = arith.constant dense<0.000000e+00> : vector<8x8xf32>
    %7 = tpu.matmul %5, %6, %cst_5 {dimension_numbers = #tpu.dot_dimension_numbers<[1], [1], [0], [0], [0, 0, 1, 0], [], []>} : vector<8x16xf32>, vector<8x16xf32>, vector<8x8xf32> -> vector<8x8xf32>
    %cst_6 = arith.constant dense<0xFF800000> : vector<8xf32>
    %8 = vector.multi_reduction <maximumf>, %7, %cst_6 [1] : vector<8x8xf32> to vector<8xf32>
    %9 = vector.shape_cast %8 : vector<8xf32> to vector<8x1xf32>
    %10 = vector.broadcast %9 : vector<8x1xf32> to vector<8x8xf32>
    %11 = arith.subf %7, %10 : vector<8x8xf32>
    %12 = math.exp %11 : vector<8x8xf32>
    %cst_7 = arith.constant dense<0.000000e+00> : vector<8xf32>
    %13 = vector.multi_reduction <add>, %12, %cst_7 [1] : vector<8x8xf32> to vector<8xf32>
    %14 = vector.shape_cast %13 : vector<8xf32> to vector<8x1xf32>
    %15 = vector.broadcast %14 : vector<8x1xf32> to vector<8x8xf32>
    %16 = arith.divf %12, %15 : vector<8x8xf32>
    %c1 = arith.constant 1 : index
    %c0_8 = arith.constant 0 : index
    %c0_9 = arith.constant 0 : index
    %17 = vector.load %arg2[%c1, %c0_8, %c0_9] : memref<2x8x32xf32, #tpu.memory_space<vmem>>, vector<1x8x32xf32>
    %18 = vector.shape_cast %17 : vector<1x8x32xf32> to vector<8x32xf32>
    %cst_10 = arith.constant dense<0.000000e+00> : vector<8x32xf32>
    %19 = tpu.matmul %16, %18, %cst_10 {dimension_numbers = #tpu.dot_dimension_numbers<[1], [0], [0], [1], [0, 0, 1, 1], [], []>} : vector<8x8xf32>, vector<8x32xf32>, vector<8x32xf32> -> vector<8x32xf32>
    %20 = vector.extract_strided_slice %19 {offsets = [0, 0], sizes = [8, 16], strides = [1, 1]} : vector<8x32xf32> to vector<8x16xf32>
    %21 = vector.extract_strided_slice %19 {offsets = [0, 16], sizes = [8, 16], strides = [1, 1]} : vector<8x32xf32> to vector<8x16xf32>
    %cst_11 = arith.constant dense<0.000000e+00> : vector<8x8xf32>
    %22 = tpu.matmul %20, %21, %cst_11 {dimension_numbers = #tpu.dot_dimension_numbers<[1], [1], [0], [0], [0, 0, 1, 0], [], []>} : vector<8x16xf32>, vector<8x16xf32>, vector<8x8xf32> -> vector<8x8xf32>
    %cst_12 = arith.constant dense<0xFF800000> : vector<8xf32>
    %23 = vector.multi_reduction <maximumf>, %22, %cst_12 [1] : vector<8x8xf32> to vector<8xf32>
    %24 = vector.shape_cast %23 : vector<8xf32> to vector<8x1xf32>
    %25 = vector.broadcast %24 : vector<8x1xf32> to vector<8x8xf32>
    %26 = arith.subf %22, %25 : vector<8x8xf32>
    %27 = math.exp %26 : vector<8x8xf32>
    %cst_13 = arith.constant dense<0.000000e+00> : vector<8xf32>
    %28 = vector.multi_reduction <add>, %27, %cst_13 [1] : vector<8x8xf32> to vector<8xf32>
    %29 = vector.shape_cast %28 : vector<8xf32> to vector<8x1xf32>
    %30 = vector.broadcast %29 : vector<8x1xf32> to vector<8x8xf32>
    %31 = arith.divf %27, %30 : vector<8x8xf32>
    %c0_14 = arith.constant 0 : index
    %c0_15 = arith.constant 0 : index
    %c0_16 = arith.constant 0 : index
    %32 = vector.load %arg3[%c0_14, %c0_15, %c0_16] : memref<1x8x8xf32, #tpu.memory_space<vmem>>, vector<1x8x8xf32>
    %33 = vector.shape_cast %32 : vector<1x8x8xf32> to vector<8x8xf32>
    %34 = vector.shape_cast %31 : vector<8x8xf32> to vector<1x8x8xf32>
    tpu.vector_store %arg3[%c0_14, %c0_15, %c0_16], %34 {strides = array<i32>} : memref<1x8x8xf32, #tpu.memory_space<vmem>>, vector<1x8x8xf32>,
    return
  }
  func.func @transform_0(%arg0: i32) -> (i32, i32, i32) {
    %c0_i32 = arith.constant 0 : i32
    %c0_i32_0 = arith.constant 0 : i32
    %c0_i32_1 = arith.constant 0 : i32
    return %arg0, %c0_i32, %c0_i32_0 : i32, i32, i32
  }
  func.func @transform_1(%arg0: i32) -> (i32, i32, i32) {
    %c0_i32 = arith.constant 0 : i32
    %c0_i32_0 = arith.constant 0 : i32
    %c0_i32_1 = arith.constant 0 : i32
    %c0_i32_2 = arith.constant 0 : i32
    return %c0_i32, %c0_i32_0, %c0_i32_1 : i32, i32, i32
  }
  func.func @transform_2(%arg0: i32) -> (i32, i32, i32) {
    %c0_i32 = arith.constant 0 : i32
    %c0_i32_0 = arith.constant 0 : i32
    %c0_i32_1 = arith.constant 0 : i32
    return %arg0, %c0_i32, %c0_i32_0 : i32, i32, i32
  }
}

</mosaic_0001>

<llo_original>
// kernel: tpu_custom_call.1
$region0: #{tpu_custom_call.1}
  #allocation0 [shape = 'u32[]', space=smem, size = 0x4, offset = 0x4, fixed_abs, tag = 'smem constant byte address 0x4 - core index']
  #allocation1 [shape = 'u32[72,128]{1,0:T(1,128)}', space=vmem, size = 0x9000, scoped, tag = 'internal scratch']
  %s0 = inlined_call_operand.hbm [shape: f32[2,8,8], index: 0, kind: input, shape index: {}]
  %s1 = inlined_call_operand.hbm [shape: f32[2,8,32], index: 1, kind: input, shape index: {}]
  %s2 = inlined_call_operand.hbm [shape: f32[2,8,8], index: 2, kind: output, shape index: {}]
  %s3 = sld [smem:[#allocation0]]
  $region49: #{tpu_custom_call.1} parent=0
    _
  %s5 = ssub.s32 1, %s3
  %s6 = scalar_select 0, %s5, %s3
  $region1: #{tpu_custom_call.1} parent=0
    #allocation2 [shape = 'u8[8192]{0}', space=vmem, size = 0x2000, scoped, tag = 'input window, operand 0']
    #allocation3 [shape = 's32[2]{0}', space=sflag, size = 0x8, scoped, tag = 'scoped memory for tpu_custom_call.1']
    #allocation4 [shape = 's32[2]{0}', space=sflag, size = 0x8, scoped, tag = 'scoped memory for tpu_custom_call.1']
    #allocation5 [shape = 'u8[8192]{0}', space=vmem, size = 0x2000, scoped, tag = 'input window, operand 1, single buffered']
    #allocation6 [shape = 's32[1]{0}', space=sflag, size = 0x4, scoped, tag = 'scoped memory for tpu_custom_call.1']
    #allocation7 [shape = 'u8[8192]{0}', space=vmem, size = 0x2000, scoped, tag = 'output window, operand 0']
    %7 = vsyncpa [#allocation3], 0
    %s8 = scalar_lea.sflag [#allocation3], 1
    %9 = vsyncpa %s8, 0
    %10 = vsyncpa [#allocation6], 0
    %11 = vsyncpa [#allocation4], 0
    %s12 = scalar_lea.sflag [#allocation4], 1
    %13 = vsyncpa %s12, 0
    loop: start=0, step=1, limit=4
    $region2: #{tpu_custom_call.1} parent=1 // loop_pre_header
      _
    $region3: #{tpu_custom_call.1} parent=1 // loop_header
      %s15 = sphi 0, %s19
      %p16 = scmp.ge.s32.totalorder %s15, 4
      %s25 = sphi 0, %s27
      %s28 = sphi 0, %s25
      %s29 = sphi 0, %s28
      %s45 = sphi 0, %s29
      %s49 = sphi 0, %s49
      %s51 = sphi 0, %s49
      %s52 = sphi 0, %s51
      %s66 = sphi 0, %s52
      %s72 = sphi 0, %s74
      %s75 = sphi 0, %s72
      %s76 = sphi 0, %s75
      %s92 = sphi 0, %s76
    $region4: #{tpu_custom_call.1} parent=1 // loop_header_branch
      %18 = sbr.rel (%p16) target = $region8
    $region5: #{tpu_custom_call.1} parent=1 // loop_body
      %s20 = ssub.s32 %s15, 1
      %s21 = ssub.s32 %s15, 2
      %s22 = sadd.s32 %s15, 1
      %s23 = ssub.s32 %s15, %s22
      %p24 = scmp.eq.s32.totalorder %s23, 0
      %s26 = sadd.s32 %s25, 1
      %s27 = scalar_select %p24, %s25, %s26
      %p30 = pneg %p24
      %p31 = scmp.eq.s32.totalorder %s15, 1
      %p32 = por %p30, %p31
      %p33 = scmp.ne.s32.totalorder %s25, %s28
      %p34 = scmp.eq.s32.totalorder %s15, 0
      %p35 = por %p33, %p34
      %p36 = scmp.ne.s32.totalorder %s25, %s28
      %p37 = scmp.eq.s32.totalorder %s20, 1
      %p38 = por %p36, %p37
      %p39 = scmp.ne.s32.totalorder %s28, %s29
      %p40 = scmp.eq.s32.totalorder %s20, 0
      %p41 = por %p39, %p40
      %p42 = scmp.ne.s32.totalorder %s28, %s29
      %p43 = scmp.eq.s32.totalorder %s21, 1
      %p44 = por %p42, %p43
      %p46 = scmp.ne.s32.totalorder %s29, %s45
      %p47 = scmp.eq.s32.totalorder %s21, 0
      %p48 = por %p46, %p47
      %s50 = sadd.s32 %s49, 1
      %p53 = scmp.eq.s32.totalorder %s15, 1
      %p54 = scmp.ne.s32.totalorder %s49, %s51
      %p55 = scmp.eq.s32.totalorder %s15, 0
      %p56 = por %p54, %p55
      %p57 = scmp.ne.s32.totalorder %s49, %s51
      %p58 = scmp.eq.s32.totalorder %s20, 1
      %p59 = por %p57, %p58
      %p60 = scmp.ne.s32.totalorder %s51, %s52
      %p61 = scmp.eq.s32.totalorder %s20, 0
      %p62 = por %p60, %p61
      %p63 = scmp.ne.s32.totalorder %s51, %s52
      %p64 = scmp.eq.s32.totalorder %s21, 1
      %p65 = por %p63, %p64
      %p67 = scmp.ne.s32.totalorder %s52, %s66
      %p68 = scmp.eq.s32.totalorder %s21, 0
      %p69 = por %p67, %p68
      %s70 = ssub.s32 %s15, %s22
      %p71 = scmp.eq.s32.totalorder %s70, 0
      %s73 = sadd.s32 %s72, 1
      %s74 = scalar_select %p71, %s72, %s73
      %p77 = pneg %p71
      %p78 = scmp.eq.s32.totalorder %s15, 1
      %p79 = por %p77, %p78
      %p80 = scmp.ne.s32.totalorder %s72, %s75
      %p81 = scmp.eq.s32.totalorder %s15, 0
      %p82 = por %p80, %p81
      %p83 = scmp.ne.s32.totalorder %s72, %s75
      %p84 = scmp.eq.s32.totalorder %s20, 1
      %p85 = por %p83, %p84
      %p86 = scmp.ne.s32.totalorder %s75, %s76
      %p87 = scmp.eq.s32.totalorder %s20, 0
      %p88 = por %p86, %p87
      %p89 = scmp.ne.s32.totalorder %s75, %s76
      %p90 = scmp.eq.s32.totalorder %s21, 1
      %p91 = por %p89, %p90
      %p93 = scmp.ne.s32.totalorder %s76, %s92
      %p94 = scmp.eq.s32.totalorder %s21, 0
      %p95 = por %p93, %p94
      %p96 = scmp.le.s32.totalorder 1, %s15
      %p97 = scmp.lt.s32.totalorder %s15, 3
      %p98 = pnand %p96, %p97
      %p99 = pneg %p98
      // Predicated region
      $region9: #{tpu_custom_call.1} parent=5 // pred_check
        _
      $region10: #{tpu_custom_call.1} parent=5 // pred_check_branch
        %101 = sbr.rel (%p98) target = $region12
      $region11: #{tpu_custom_call.1} parent=5 // pred_region
        %s102 = ssub.s32 %s15, 1
        // Predicated region
        $region13: #{tpu_custom_call.1} parent=11 // pred_check
          %p103 = pneg %p62
        $region14: #{tpu_custom_call.1} parent=11 // pred_check_branch
          %105 = sbr.rel (%p103) target = $region16
        $region15: #{tpu_custom_call.1} parent=11 // pred_region
          %107 = vsyncadd [#allocation6], 0
          %s108 = sshll.u32 %s1, 4
          %s109 = int_to_ptr.hbm [resolvable:$true] %s108
          %s110 = sshll.u32 [#allocation5], 4
          %s111 = int_to_ptr.vmem [resolvable:$true] %s110
          %116 = dma.hbm_to_vmem [thread:$0]  %s109, 256, %s111, [#allocation6], 128, 128, 8
        $region16: #{tpu_custom_call.1} parent=11 // pred_fallthru
          _
      $region12: #{tpu_custom_call.1} parent=5 // pred_fallthru
        _
      %p117 = scmp.lt.s32.totalorder %s15, 2
      // Predicated region
      $region17: #{tpu_custom_call.1} parent=5 // pred_check
        %p118 = pneg %p117
      $region18: #{tpu_custom_call.1} parent=5 // pred_check_branch
        %120 = sbr.rel (%p118) target = $region20
      $region19: #{tpu_custom_call.1} parent=5 // pred_region
        // Predicated region
        $region21: #{tpu_custom_call.1} parent=19 // pred_check
          %p121 = pneg %p35
        $region22: #{tpu_custom_call.1} parent=19 // pred_check_branch
          %123 = sbr.rel (%p121) target = $region24
        $region23: #{tpu_custom_call.1} parent=19 // pred_region
          %s124 = sand.u32 %s25, 1
          %s125 = scalar_lea.sflag [#allocation3], %s124
          %s126 = sand.u32 %s25, 1
          %s127 = smul.addr %s126, 8
          %s128 = scalar_lea.vmem [#allocation2], %s127
          %130 = vsyncadd %s125, 0
          %s131 = smul.addr %s15, 8
          %s132 = scalar_lea.hbm %s0, %s131
          %s134 = sshll.u32 %s132, 4
          %s135 = int_to_ptr.hbm [resolvable:$true] %s134
          %s136 = sshll.u32 %s128, 4
          %s137 = int_to_ptr.vmem [resolvable:$true] %s136
          %139 = dma.hbm_to_vmem [thread:$0]  %s135, 128, %s137, %s125
        $region24: #{tpu_custom_call.1} parent=19 // pred_fallthru
          _
      $region20: #{tpu_custom_call.1} parent=5 // pred_fallthru
        _
      %p140 = scmp.le.s32.totalorder 1, %s15
      %p141 = scmp.lt.s32.totalorder %s15, 3
      %p142 = pnand %p140, %p141
      %p143 = pneg %p142
      // Predicated region
      $region25: #{tpu_custom_call.1} parent=5 // pred_check
        _
      $region26: #{tpu_custom_call.1} parent=5 // pred_check_branch
        %145 = sbr.rel (%p142) target = $region28
      $region27: #{tpu_custom_call.1} parent=5 // pred_region
        %s146 = ssub.s32 %s15, 1
        %s147 = sand.u32 %s28, 1
        %s148 = scalar_lea.sflag [#allocation3], %s147
        %s149 = sand.u32 %s28, 1
        %s150 = smul.addr %s149, 8
        %s151 = scalar_lea.vmem [#allocation2], %s150
        // Predicated region
        $region29: #{tpu_custom_call.1} parent=27 // pred_check
          %p152 = pneg %p41
        $region30: #{tpu_custom_call.1} parent=27 // pred_check_branch
          %154 = sbr.rel (%p152) target = $region32
        $region31: #{tpu_custom_call.1} parent=27 // pred_region
          %156 = dma.done %s148, 128
        $region32: #{tpu_custom_call.1} parent=27 // pred_fallthru
          _
        // Predicated region
        $region33: #{tpu_custom_call.1} parent=27 // pred_check
          %p157 = pneg %p62
        $region34: #{tpu_custom_call.1} parent=27 // pred_check_branch
          %159 = sbr.rel (%p157) target = $region36
        $region35: #{tpu_custom_call.1} parent=27 // pred_region
          %161 = dma.done [#allocation6], 256
        $region36: #{tpu_custom_call.1} parent=27 // pred_fallthru
          _
        %s162 = sand.u32 %s28, 1
        %s163 = scalar_lea.sflag [#allocation3], %s162
        %s164 = sand.u32 %s28, 1
        %s165 = smul.addr %s164, 8
        %s166 = scalar_lea.vmem [#allocation2], %s165
        %p167 = pneg %p41
        %p168 = pneg %p38
        %p169 = pneg %p62
        %p170 = pneg %p59
        %p171 = pneg %p88
        %p172 = pneg %p85
        %s173 = sand.u32 %s75, 1
        %s174 = scalar_lea.sflag [#allocation4], %s173
        %s175 = sand.u32 %s75, 1
        %s176 = smul.addr %s175, 8
        %s177 = scalar_lea.vmem [#allocation7], %s176
        %v178 = vld [vmem:[%s151] sm:$0xff]
        %v179 = vld [vmem:[#allocation5] sm:$0xff]
        %vm180 = vcmask 64512
        %v182 = vsel %vm180, %v178, 0
        %184 = vmatpush.msra.mxu0 0.0
        %185 = vmatpush.msra.mxu0 0.0
        %186 = vmatpush.msra.mxu0 0.0
        %187 = vmatpush.msra.mxu0 0.0
        %188 = vmatpush.msra.mxu0 0.0
        %189 = vmatpush.msra.mxu0 0.0
        %190 = vmatpush.msra.mxu0 0.0
        %191 = vmatpush.msra.mxu0 0.0
        %192 = vmatpush.msra.mxu0 0.0
        %193 = vmatpush.msra.mxu0 0.0
        %194 = vmatpush.msra.mxu0 0.0
        %195 = vmatpush.msra.mxu0 0.0
        %196 = vmatpush.msra.mxu0 0.0
        %197 = vmatpush.msra.mxu0 0.0
        %198 = vmatpush.msra.mxu0 0.0
        %199 = vmatpush.msra.mxu0 %v179
        %200 = vmatmul.f32.gmra.mxu0 %v182
        %v201 = vpop.f32.mrf.mxu0
        %v202 = vadd.f32 0.0, %v201
        %203 = vdwg.mxu0
        %205 = vrot.lane.b32.xlu0 %v202, 112
        %v206 = vpop.permute.xlu0 %205
        %vm207 = vcmask 130048
        %v208 = vsel %vm207, %v202, 0
        %v210 = vsel %vm207, %v206, 0
        %212 = vmatpush.xpose.msra.mxu0 0.0
        %213 = vmatpush.xpose.msra.mxu0 0.0
        %214 = vmatpush.xpose.msra.mxu0 0.0
        %215 = vmatpush.xpose.msra.mxu0 0.0
        %216 = vmatpush.xpose.msra.mxu0 0.0
        %217 = vmatpush.xpose.msra.mxu0 0.0
        %218 = vmatpush.xpose.msra.mxu0 0.0
        %219 = vmatpush.xpose.msra.mxu0 0.0
        %220 = vmatpush.xpose.msra.mxu0 0.0
        %221 = vmatpush.xpose.msra.mxu0 0.0
        %222 = vmatpush.xpose.msra.mxu0 0.0
        %223 = vmatpush.xpose.msra.mxu0 0.0
        %224 = vmatpush.xpose.msra.mxu0 0.0
        %225 = vmatpush.xpose.msra.mxu0 0.0
        %226 = vmatpush.xpose.msra.mxu0 0.0
        %227 = vmatpush.xpose.msra.mxu0 %v210
        %228 = vmatmul.f32.gmra.mxu0 %v208
        %v229 = vpop.f32.mrf.mxu0
        %v230 = vadd.f32 0.0, %v229
        %231 = vdwg.mxu0
        %v232 = vsel %vm180, %v230, -inf
        %233 = vmax.xlane.f32.xlu0 %v232
        %v234 = vpop.xlane.xlu0 %233
        %v235 = vsub.f32 %v230, %v234
        %v236 = vmul.f32 %v235, 1.442695
        %v237 = vpow.pop %v236
        %v238 = vsel %vm180, %v237, 0.0
        %239 = vadd.xlane.f32.xlu0 %v238
        %v240 = vpop.xlane.xlu0 %239
        %v241 = vrcp.pop %v240
        %v242 = vmul.f32 %v240, %v241
        %v243 = vsub.f32 1.0, %v242
        %v244 = vmul.f32 %v241, %v243
        %v245 = vadd.f32 %v241, %v244
        %vm246 = vweird.f32 %v240
        %vm247 = vweird.f32 %v241
        %vm248 = vmor %vm246, %vm247
        %v249 = vsel %vm248, %v241, %v245
        %v250 = vand.u32 2147483647, %v240
        %vm251 = vcmp.eq.f32.partialorder %v250, 8.507059e+37
        %v252 = vand.u32 %v240, 2147483648
        %v253 = vor.u32 1.1754944e-38, %v252
        %v254 = vsel %vm251, %v253, %v249
        %v255 = vmul.f32 %v237, %v254
        %s256 = scalar_lea.vmem [#allocation5], 8
        %v257 = vld [vmem:[%s256] sm:$0xff]
        %v259 = vsel %vm180, %v255, 0
        %261 = vmatpush.msra.mxu0 0.0
        %262 = vmatpush.msra.mxu0 0.0
        %263 = vmatpush.msra.mxu0 0.0
        %264 = vmatpush.msra.mxu0 0.0
        %265 = vmatpush.msra.mxu0 0.0
        %266 = vmatpush.msra.mxu0 0.0
        %267 = vmatpush.msra.mxu0 0.0
        %268 = vmatpush.msra.mxu0 0.0
        %269 = vmatpush.msra.mxu0 0.0
        %270 = vmatpush.msra.mxu0 0.0
        %271 = vmatpush.msra.mxu0 0.0
        %272 = vmatpush.msra.mxu0 0.0
        %273 = vmatpush.msra.mxu0 0.0
        %274 = vmatpush.msra.mxu0 0.0
        %275 = vmatpush.msra.mxu0 0.0
        %276 = vmatpush.msra.mxu0 %v257
        %277 = vmatmul.f32.gmra.mxu0 %v259
        %v278 = vpop.f32.mrf.mxu0
        %v279 = vadd.f32 0.0, %v278
        %280 = vdwg.mxu0
        %282 = vrot.lane.b32.xlu0 %v279, 112
        %v283 = vpop.permute.xlu0 %282
        %v284 = vsel %vm207, %v279, 0
        %v286 = vsel %vm207, %v283, 0
        %288 = vmatpush.xpose.msra.mxu0 0.0
        %289 = vmatpush.xpose.msra.mxu0 0.0
        %290 = vmatpush.xpose.msra.mxu0 0.0
        %291 = vmatpush.xpose.msra.mxu0 0.0
        %292 = vmatpush.xpose.msra.mxu0 0.0
        %293 = vmatpush.xpose.msra.mxu0 0.0
        %294 = vmatpush.xpose.msra.mxu0 0.0
        %295 = vmatpush.xpose.msra.mxu0 0.0
        %296 = vmatpush.xpose.msra.mxu0 0.0
        %297 = vmatpush.xpose.msra.mxu0 0.0
        %298 = vmatpush.xpose.msra.mxu0 0.0
        %299 = vmatpush.xpose.msra.mxu0 0.0
        %300 = vmatpush.xpose.msra.mxu0 0.0
        %301 = vmatpush.xpose.msra.mxu0 0.0
        %302 = vmatpush.xpose.msra.mxu0 0.0
        %303 = vmatpush.xpose.msra.mxu0 %v286
        %304 = vmatmul.f32.gmra.mxu0 %v284
        %v305 = vpop.f32.mrf.mxu0
        %v306 = vadd.f32 0.0, %v305
        %307 = vdwg.mxu0
        %v308 = vsel %vm180, %v306, -inf
        %309 = vmax.xlane.f32.xlu0 %v308
        %v310 = vpop.xlane.xlu0 %309
        %v311 = vsub.f32 %v306, %v310
        %v312 = vmul.f32 %v311, 1.442695
        %v313 = vpow.pop %v312
        %v314 = vsel %vm180, %v313, 0.0
        %315 = vadd.xlane.f32.xlu0 %v314
        %v316 = vpop.xlane.xlu0 %315
        %v317 = vrcp.pop %v316
        %v318 = vmul.f32 %v316, %v317
        %v319 = vsub.f32 1.0, %v318
        %v320 = vmul.f32 %v317, %v319
        %v321 = vadd.f32 %v317, %v320
        %vm322 = vweird.f32 %v316
        %vm323 = vweird.f32 %v317
        %vm324 = vmor %vm322, %vm323
        %v325 = vsel %vm324, %v317, %v321
        %v326 = vand.u32 2147483647, %v316
        %vm327 = vcmp.eq.f32.partialorder %v326, 8.507059e+37
        %v328 = vand.u32 %v316, 2147483648
        %v329 = vor.u32 1.1754944e-38, %v328
        %v330 = vsel %vm327, %v329, %v325
        %v331 = vmul.f32 %v313, %v330
        %332 = vst.msk [vmem:[%s177] sm:$0xff] %vm180, %v331
        %s333 = sand.u32 %s75, 1
        %s334 = scalar_lea.sflag [#allocation4], %s333
        %s335 = sand.u32 %s75, 1
        %s336 = smul.addr %s335, 8
        %s337 = scalar_lea.vmem [#allocation7], %s336
        // Predicated region
        $region37: #{tpu_custom_call.1} parent=27 // pred_check
          %p338 = pneg %p85
        $region38: #{tpu_custom_call.1} parent=27 // pred_check_branch
          %340 = sbr.rel (%p338) target = $region40
        $region39: #{tpu_custom_call.1} parent=27 // pred_region
          %342 = vsyncadd %s334, 0
          %s343 = smul.addr %s20, 8
          %s344 = scalar_lea.hbm %s2, %s343
          %s346 = sshll.u32 %s337, 4
          %s347 = int_to_ptr.vmem [resolvable:$true] %s346
          %s348 = sshll.u32 %s344, 4
          %s349 = int_to_ptr.hbm [resolvable:$true] %s348
          %351 = dma.vmem_to_hbm [thread:$0]  %s347, 128, %s349, %s334
        $region40: #{tpu_custom_call.1} parent=27 // pred_fallthru
          _
      $region28: #{tpu_custom_call.1} parent=5 // pred_fallthru
        _
      %p352 = scmp.le.s32.totalorder 2, %s15
      // Predicated region
      $region41: #{tpu_custom_call.1} parent=5 // pred_check
        %p353 = pneg %p352
      $region42: #{tpu_custom_call.1} parent=5 // pred_check_branch
        %355 = sbr.rel (%p353) target = $region44
      $region43: #{tpu_custom_call.1} parent=5 // pred_region
        %s356 = ssub.s32 %s15, 2
        // Predicated region
        $region45: #{tpu_custom_call.1} parent=43 // pred_check
          %p357 = pneg %p91
        $region46: #{tpu_custom_call.1} parent=43 // pred_check_branch
          %359 = sbr.rel (%p357) target = $region48
        $region47: #{tpu_custom_call.1} parent=43 // pred_region
          %s360 = sand.u32 %s76, 1
          %s361 = scalar_lea.sflag [#allocation4], %s360
          %s362 = sand.u32 %s76, 1
          %s363 = smul.addr %s362, 8
          %s364 = scalar_lea.vmem [#allocation7], %s363
          %366 = dma.done %s361, 128
        $region48: #{tpu_custom_call.1} parent=43 // pred_fallthru
          _
      $region44: #{tpu_custom_call.1} parent=5 // pred_fallthru
        _
    $region6: #{tpu_custom_call.1} parent=1 // loop_footer
      %s19 = sadd.s32 1, %s15
    $region7: #{tpu_custom_call.1} parent=1 // loop_footer_branch
      %14 = sbr.rel target = $region3
    $region8: #{tpu_custom_call.1} parent=1 // loop_exit
      _
    %367 = vsyncpa [#allocation3], 1
    %s368 = scalar_lea.sflag [#allocation3], 1
    %369 = vsyncpa %s368, 1
    %370 = vsyncpa [#allocation6], 1
    %371 = vsyncpa [#allocation4], 1
    %s372 = scalar_lea.sflag [#allocation4], 1
    %373 = vsyncpa %s372, 1

</llo_original>
